<compile_context>
chip_gen: v7x
topology: tpu7x:2x2x1
jax: 0.10.0
libtpu: 0.0.40
codegen_flags: <defaults>
</compile_context>

<pallas_src>
import jax
import jax.numpy as jnp
from jax.experimental import pallas as pl
from jax.experimental.pallas import tpu as pltpu


def _round_up(n, m):
    return (n + m - 1) // m * m


def default_pack():
    """Batch rows folded per packed row. v5e is MXU-push-bound at 16 -> use 8 there."""
    try:
        kind = jax.devices()[0].device_kind.lower()
    except Exception:
        return 16
    if "v5 lite" in kind or "v5e" in kind or "v5litepod" in kind:
        return 8
    return 16


def fcnn_kernel(x_ref, w1_ref, b1_ref, w2_ref, b2_ref, w3_ref, b3_ref, o_ref):
    cdt = w1_ref.dtype
    # In-kernel streaming cast (this is the `.float()` when cdt == f32; bf16 otherwise).
    x = x_ref[...].astype(cdt)
    h = jnp.dot(x, w1_ref[...], preferred_element_type=jnp.float32)
    h = jnp.maximum(h.astype(cdt) + b1_ref[...], 0)          # compute-dtype epilogue
    h = jnp.dot(h, w2_ref[...], preferred_element_type=jnp.float32)
    h = jnp.maximum(h.astype(cdt) + b2_ref[...], 0)
    y = jnp.dot(h, w3_ref[...], preferred_element_type=jnp.float32)
    o_ref[...] = (y + b3_ref[...]).astype(o_ref.dtype)        # final bias-add in f32


def pack_params(params, *, pack=None, compute_dtype=jnp.bfloat16):
    """One-time, batch-independent parameter packing: block-diagonal kron(I_pack, W)."""
    if pack is None:
        pack = default_pack()
    w1, b1, w2, b2, w3, b3 = params
    eye = jnp.eye(pack, dtype=jnp.float32)

    def kron(w):
        return jnp.kron(eye, w.astype(jnp.float32)).astype(compute_dtype)

    def tile(b, dt):
        return jnp.tile(b.astype(jnp.float32).reshape(1, -1), (1, pack)).astype(dt)

    return {
        "pack": pack,
        "in_dim": int(w1.shape[0]),
        "h1": int(w1.shape[1]),
        "h2": int(w2.shape[1]),
        "out_dim": int(w3.shape[1]),
        "w1p": kron(w1), "b1p": tile(b1, compute_dtype),
        "w2p": kron(w2), "b2p": tile(b2, compute_dtype),
        "w3p": kron(w3), "b3p": tile(b3, jnp.float32),   # final bias-add stays f32
    }


def fcnn_forward(x, packed, *, tile_rows=2048, out_dtype=None):
    """Forward matching FCNN: torch.flatten(x, 1).float() -> Linear/ReLU/Linear/ReLU/Linear."""
    pack, in_dim, out_dim = packed["pack"], packed["in_dim"], packed["out_dim"]
    h1, h2 = packed["h1"], packed["h2"]
    w1p, b1p = packed["w1p"], packed["b1p"]
    w2p, b2p = packed["w2p"], packed["b2p"]
    w3p, b3p = packed["w3p"], packed["b3p"]
    compute_dtype = w1p.dtype
    if out_dtype is None:
        out_dtype = compute_dtype

    B = x.shape[0]
    x_flat = x.reshape(B, -1)                     # torch.flatten(x, 1): free view, no copy
    assert x_flat.shape[1] == in_dim

    # Pad only to a multiple of `pack` (<= pack-1 rows) so the packed reshape is legal.
    B_pad = _round_up(B, pack)
    if B_pad != B:
        x_flat = jnp.pad(x_flat, ((0, B_pad - B), (0, 0)))
    rows = B_pad // pack
    kin, kout = pack * in_dim, pack * out_dim
    x_packed = x_flat.reshape(rows, kin)          # free row-major view: pack rows / packed row

    # Tiling: sublane-aligned blocks; force >= 2 blocks when there is enough work so the
    # "parallel" batch axis can be sharded across v7x's two TensorCores. Last block may
    # be ragged (Pallas blocked specs tolerate the partial final block).
    MIN_TB = 16
    if rows < 2 * MIN_TB:
        tb = rows                                 # one full-extent block (legal at any size)
    else:
        tb = min(_round_up(tile_rows, MIN_TB), _round_up(pl.cdiv(rows, 2), MIN_TB))
        tb = _round_up(pl.cdiv(rows, pl.cdiv(rows, tb)), MIN_TB)   # balance the blocks
    n_blocks = pl.cdiv(rows, tb)

    in_item = x_flat.dtype.itemsize
    w_item = jnp.dtype(compute_dtype).itemsize
    out_item = jnp.dtype(out_dtype).itemsize
    w_bytes = sum(int(a.size) * a.dtype.itemsize
                  for a in (w1p, b1p, w2p, b2p, w3p, b3p))

    # Dense block-diagonal FLOP count (kron(I_pack, W) multiplies per-layer work by pack).
    cost = pl.CostEstimate(
        flops=2 * rows * pack * pack * (in_dim * h1 + h1 * h2 + h2 * out_dim),
        transcendentals=0,
        bytes_accessed=rows * kin * in_item + rows * kout * out_item + w_bytes,
    )

    # VMEM budget: double-buffered x + out, resident weights, per-layer intermediates.
    vmem_est = (2 * tb * kin * in_item + 2 * tb * kout * out_item + w_bytes
                + tb * pack * h1 * (4 + w_item) + tb * pack * h2 * (4 + w_item)
                + tb * kout * 4)
    vmem_limit = int(min(56 * 1024 * 1024, max(32 * 1024 * 1024, 2 * vmem_est)))

    def const_spec(shape):
        return pl.BlockSpec(shape, lambda i: (0, 0))   # VMEM-resident across grid steps

    out_packed = pl.pallas_call(
        fcnn_kernel,
        out_shape=jax.ShapeDtypeStruct((rows, kout), out_dtype),
        grid=(n_blocks,),
        in_specs=[
            pl.BlockSpec((tb, kin), lambda i: (i, 0)),
            const_spec(w1p.shape), const_spec(b1p.shape),
            const_spec(w2p.shape), const_spec(b2p.shape),
            const_spec(w3p.shape), const_spec(b3p.shape),
        ],
        out_specs=pl.BlockSpec((tb, kout), lambda i: (i, 0)),
        compiler_params=pltpu.CompilerParams(
            dimension_semantics=("parallel",),
            vmem_limit_bytes=vmem_limit,
        ),
        cost_estimate=cost,
    )(x_packed, w1p, b1p, w2p, b2p, w3p, b3p)

    return out_packed.reshape(B_pad, out_dim)[:B]      # free view back to (B, 2) + slice


def init_params(key, in_channels=25, h1=32, h2=16, out_channels=2):
    """nn.Linear-style uniform(-1/sqrt(fan_in), 1/sqrt(fan_in)) init, stored as (in, out)."""
    ks = jax.random.split(key, 6)

    def linear(kw, kb, fan_in, fan_out):
        bound = 1.0 / jnp.sqrt(fan_in)
        w = jax.random.uniform(kw, (fan_in, fan_out), jnp.float32, -bound, bound)
        b = jax.random.uniform(kb, (1, fan_out), jnp.float32, -bound, bound)
        return w, b

    w1, b1 = linear(ks[0], ks[1], in_channels, h1)
    w2, b2 = linear(ks[2], ks[3], h1, h2)
    w3, b3 = linear(ks[4], ks[5], h2, out_channels)
    return (w1, b1, w2, b2, w3, b3)


def fcnn_reference(x, params):
    """Plain-JAX reference (high-precision dots)."""
    w1, b1, w2, b2, w3, b3 = params
    dot = lambda a, b: jnp.dot(a, b, precision=jax.lax.Precision.HIGHEST)
    h = x.reshape(x.shape[0], -1).astype(jnp.float32)
    h = jnp.maximum(dot(h, w1) + b1, 0.0)
    h = jnp.maximum(dot(h, w2) + b2, 0.0)
    return dot(h, w3) + b3


if __name__ == "__main__":
    key = jax.random.PRNGKey(0)
    k_param, k1, k2, k3 = jax.random.split(key, 4)
    params = init_params(k_param)

    # One-time parameter packing (hoisted out of the forward pass per perf review).
    packed_f32 = pack_params(params, compute_dtype=jnp.float32)    # exact .float() path
    packed_bf16 = pack_params(params, compute_dtype=jnp.bfloat16)  # streaming bf16 path

    # in_channels=25 -> feed (B, 5, 5) so flatten(x, 1) gives (B, 25); also a flat input.
    x_small = jax.random.normal(k1, (8, 5, 5), dtype=jnp.float32)
    x_pad = jax.random.normal(k2, (300, 5, 5), dtype=jnp.float32)   # B % pack != 0
    x_multi = jax.random.normal(k3, (1024, 25), dtype=jnp.float32)  # multi-block grid

    # f32 path (matches the PyTorch module's .float() semantics), single tiny block.
    out = jax.block_until_ready(fcnn_forward(x_small, packed_f32))
    ref = fcnn_reference(x_small, params)
    assert out.shape == (8, 2), out.shape
    assert out.dtype == jnp.float32
    assert jnp.allclose(out, ref, atol=1e-2, rtol=1e-2), "f32 mismatch (small batch)"

    # Pack-padding path (B not a multiple of pack) + ragged tail slice.
    out = jax.block_until_ready(fcnn_forward(x_pad, packed_f32))
    ref = fcnn_reference(x_pad, params)
    assert out.shape == (300, 2), out.shape
    assert jnp.allclose(out, ref, atol=1e-2, rtol=1e-2), "f32 mismatch (pack-pad batch)"

    # Default bf16-streaming path, multi-block grid (>=2 blocks), bf16 output.
    out = jax.block_until_ready(fcnn_forward(x_multi, packed_bf16))
    ref = fcnn_reference(x_multi, params)
    assert out.shape == (1024, 2), out.shape
    assert jnp.allclose(out.astype(jnp.float32), ref, atol=5e-2, rtol=5e-2), "bf16 mismatch"

    print("KERNEL_OK")
</pallas_src>

<mosaic_0001>
module attributes {stable_mosaic.version = 11 : i64} {
  func.func @fcnn_kernel(%arg0: i32, %arg1: memref<1x400xf32, #tpu.memory_space<vmem>>, %arg2: memref<400x512xf32, #tpu.memory_space<vmem>>, %arg3: memref<1x512xf32, #tpu.memory_space<vmem>>, %arg4: memref<512x256xf32, #tpu.memory_space<vmem>>, %arg5: memref<1x256xf32, #tpu.memory_space<vmem>>, %arg6: memref<256x32xf32, #tpu.memory_space<vmem>>, %arg7: memref<1x32xf32, #tpu.memory_space<vmem>>, %arg8: memref<1x32xf32, #tpu.memory_space<vmem>>) attributes {dimension_semantics = [#tpu.dimension_semantics<parallel>], iteration_bounds = array<i64: 1>, scalar_prefetch = 0 : i64, scratch_operands = 0 : i64, tpu.core_type = #tpu.core_type<tc>, window_params = [{transform_indices = @transform_0, window_bounds = array<i64: 1, 400>}, {pipeline_mode = #tpu.pipeline_mode<synchronous>, transform_indices = @transform_1, window_bounds = array<i64: 400, 512>}, {pipeline_mode = #tpu.pipeline_mode<synchronous>, transform_indices = @transform_2, window_bounds = array<i64: 1, 512>}, {pipeline_mode = #tpu.pipeline_mode<synchronous>, transform_indices = @transform_3, window_bounds = array<i64: 512, 256>}, {pipeline_mode = #tpu.pipeline_mode<synchronous>, transform_indices = @transform_4, window_bounds = array<i64: 1, 256>}, {pipeline_mode = #tpu.pipeline_mode<synchronous>, transform_indices = @transform_5, window_bounds = array<i64: 256, 32>}, {pipeline_mode = #tpu.pipeline_mode<synchronous>, transform_indices = @transform_6, window_bounds = array<i64: 1, 32>}, {transform_indices = @transform_7, window_bounds = array<i64: 1, 32>}]} {
    %c0 = arith.constant 0 : index
    %c0_0 = arith.constant 0 : index
    %0 = vector.load %arg1[%c0, %c0_0] : memref<1x400xf32, #tpu.memory_space<vmem>>, vector<1x400xf32>
    %c0_1 = arith.constant 0 : index
    %c0_2 = arith.constant 0 : index
    %1 = vector.load %arg2[%c0_1, %c0_2] : memref<400x512xf32, #tpu.memory_space<vmem>>, vector<400x512xf32>
    %cst = arith.constant dense<0.000000e+00> : vector<1x512xf32>
    %2 = tpu.matmul %0, %1, %cst {dimension_numbers = #tpu.dot_dimension_numbers<[1], [0], [0], [1], [0, 0, 1, 1], [], []>} : vector<1x400xf32>, vector<400x512xf32>, vector<1x512xf32> -> vector<1x512xf32>
    %c0_3 = arith.constant 0 : index
    %c0_4 = arith.constant 0 : index
    %3 = vector.load %arg3[%c0_3, %c0_4] : memref<1x512xf32, #tpu.memory_space<vmem>>, vector<1x512xf32>
    %4 = arith.addf %2, %3 : vector<1x512xf32>
    %cst_5 = arith.constant 0.000000e+00 : f32
    %5 = vector.broadcast %cst_5 : f32 to vector<1x512xf32>
    %6 = arith.maximumf %4, %5 : vector<1x512xf32>
    %c0_6 = arith.constant 0 : index
    %c0_7 = arith.constant 0 : index
    %7 = vector.load %arg4[%c0_6, %c0_7] : memref<512x256xf32, #tpu.memory_space<vmem>>, vector<512x256xf32>
    %cst_8 = arith.constant dense<0.000000e+00> : vector<1x256xf32>
    %8 = tpu.matmul %6, %7, %cst_8 {dimension_numbers = #tpu.dot_dimension_numbers<[1], [0], [0], [1], [0, 0, 1, 1], [], []>} : vector<1x512xf32>, vector<512x256xf32>, vector<1x256xf32> -> vector<1x256xf32>
    %c0_9 = arith.constant 0 : index
    %c0_10 = arith.constant 0 : index
    %9 = vector.load %arg5[%c0_9, %c0_10] : memref<1x256xf32, #tpu.memory_space<vmem>>, vector<1x256xf32>
    %10 = arith.addf %8, %9 : vector<1x256xf32>
    %cst_11 = arith.constant 0.000000e+00 : f32
    %11 = vector.broadcast %cst_11 : f32 to vector<1x256xf32>
    %12 = arith.maximumf %10, %11 : vector<1x256xf32>
    %c0_12 = arith.constant 0 : index
    %c0_13 = arith.constant 0 : index
    %13 = vector.load %arg6[%c0_12, %c0_13] : memref<256x32xf32, #tpu.memory_space<vmem>>, vector<256x32xf32>
    %cst_14 = arith.constant dense<0.000000e+00> : vector<1x32xf32>
    %14 = tpu.matmul %12, %13, %cst_14 {dimension_numbers = #tpu.dot_dimension_numbers<[1], [0], [0], [1], [0, 0, 1, 1], [], []>} : vector<1x256xf32>, vector<256x32xf32>, vector<1x32xf32> -> vector<1x32xf32>
    %c0_15 = arith.constant 0 : index
    %c0_16 = arith.constant 0 : index
    %15 = vector.load %arg7[%c0_15, %c0_16] : memref<1x32xf32, #tpu.memory_space<vmem>>, vector<1x32xf32>
    %16 = arith.addf %14, %15 : vector<1x32xf32>
    %c0_17 = arith.constant 0 : index
    %c0_18 = arith.constant 0 : index
    %17 = vector.load %arg8[%c0_17, %c0_18] : memref<1x32xf32, #tpu.memory_space<vmem>>, vector<1x32xf32>
    tpu.vector_store %arg8[%c0_17, %c0_18], %16 {strides = array<i32>} : memref<1x32xf32, #tpu.memory_space<vmem>>, vector<1x32xf32>,
    return
  }
  func.func @transform_0(%arg0: i32) -> (i32, i32) {
    %c0_i32 = arith.constant 0 : i32
    %c0_i32_0 = arith.constant 0 : i32
    return %arg0, %c0_i32 : i32, i32
  }
  func.func @transform_1(%arg0: i32) -> (i32, i32) {
    %c0_i32 = arith.constant 0 : i32
    %c0_i32_0 = arith.constant 0 : i32
    %c0_i32_1 = arith.constant 0 : i32
    return %c0_i32, %c0_i32_0 : i32, i32
  }
  func.func @transform_2(%arg0: i32) -> (i32, i32) {
    %c0_i32 = arith.constant 0 : i32
    %c0_i32_0 = arith.constant 0 : i32
    %c0_i32_1 = arith.constant 0 : i32
    return %c0_i32, %c0_i32_0 : i32, i32
  }
  func.func @transform_3(%arg0: i32) -> (i32, i32) {
    %c0_i32 = arith.constant 0 : i32
    %c0_i32_0 = arith.constant 0 : i32
    %c0_i32_1 = arith.constant 0 : i32
    return %c0_i32, %c0_i32_0 : i32, i32
  }
  func.func @transform_4(%arg0: i32) -> (i32, i32) {
    %c0_i32 = arith.constant 0 : i32
    %c0_i32_0 = arith.constant 0 : i32
    %c0_i32_1 = arith.constant 0 : i32
    return %c0_i32, %c0_i32_0 : i32, i32
  }
  func.func @transform_5(%arg0: i32) -> (i32, i32) {
    %c0_i32 = arith.constant 0 : i32
    %c0_i32_0 = arith.constant 0 : i32
    %c0_i32_1 = arith.constant 0 : i32
    return %c0_i32, %c0_i32_0 : i32, i32
  }
  func.func @transform_6(%arg0: i32) -> (i32, i32) {
    %c0_i32 = arith.constant 0 : i32
    %c0_i32_0 = arith.constant 0 : i32
    %c0_i32_1 = arith.constant 0 : i32
    return %c0_i32, %c0_i32_0 : i32, i32
  }
  func.func @transform_7(%arg0: i32) -> (i32, i32) {
    %c0_i32 = arith.constant 0 : i32
    %c0_i32_0 = arith.constant 0 : i32
    return %arg0, %c0_i32 : i32, i32
  }
}

</mosaic_0001>

<llo_original>
// kernel: tpu_custom_call.1
$region0: #{tpu_custom_call.1}
  #allocation0 [shape = 'u32[]', space=smem, size = 0x4, offset = 0x4, fixed_abs, tag = 'smem constant byte address 0x4 - core index']
  #allocation1 [shape = 'u32[144,128]{1,0:T(1,128)}', space=vmem, size = 0x12000, scoped, tag = 'internal scratch']
  %s0 = inlined_call_operand.vmem [shape: f32[1,400], index: 0, kind: input, shape index: {}]
  %s1 = inlined_call_operand.hbm [shape: f32[400,512], index: 1, kind: input, shape index: {}]
  %s2 = inlined_call_operand.vmem [shape: f32[1,512], index: 2, kind: input, shape index: {}]
  %s3 = inlined_call_operand.hbm [shape: f32[512,256], index: 3, kind: input, shape index: {}]
  %s4 = inlined_call_operand.vmem [shape: f32[1,256], index: 4, kind: input, shape index: {}]
  %s5 = inlined_call_operand.vmem [shape: f32[256,32], index: 5, kind: input, shape index: {}]
  %s6 = inlined_call_operand.vmem [shape: f32[1,32], index: 6, kind: input, shape index: {}]
  %s7 = inlined_call_operand.hbm [shape: f32[1,32], index: 7, kind: output, shape index: {}]
  %s8 = sld [smem:[#allocation0]]
  $region46: #{tpu_custom_call.1} parent=0
    _
  %s10 = ssub.s32 1, %s8
  %s11 = scalar_select 0, %s10, %s8
  $region1: #{tpu_custom_call.1} parent=0
    #allocation2 [shape = 'u8[819200]{0}', space=vmem, size = 0xc8000, scoped, tag = 'input window, operand 1, single buffered']
    #allocation3 [shape = 's32[1]{0}', space=sflag, size = 0x4, scoped, tag = 'scoped memory for tpu_custom_call.1']
    #allocation4 [shape = 's32[1]{0}', space=sflag, size = 0x4, scoped, tag = 'scoped memory for tpu_custom_call.1']
    #allocation5 [shape = 'u8[524288]{0}', space=vmem, size = 0x80000, scoped, tag = 'input window, operand 3, single buffered']
    #allocation6 [shape = 's32[1]{0}', space=sflag, size = 0x4, scoped, tag = 'scoped memory for tpu_custom_call.1']
    #allocation7 [shape = 'u8[512]{0}', space=vmem, size = 0x400, scoped, tag = 'output window, operand 0, single buffered']
    %12 = vsyncpa [#allocation3], 0
    %13 = vsyncpa [#allocation6], 0
    %14 = vsyncpa [#allocation4], 0
    // Predicated region
    $region2: #{tpu_custom_call.1} parent=1 // pred_check
      _
    $region3: #{tpu_custom_call.1} parent=1 // pred_check_branch
      %16 = sbr.rel (0) target = $region5
    $region4: #{tpu_custom_call.1} parent=1 // pred_region
      _
    $region5: #{tpu_custom_call.1} parent=1 // pred_fallthru
      _
    // Predicated region
    $region6: #{tpu_custom_call.1} parent=1 // pred_check
      _
    $region7: #{tpu_custom_call.1} parent=1 // pred_check_branch
      %18 = sbr.rel (0) target = $region9
    $region8: #{tpu_custom_call.1} parent=1 // pred_region
      %s20 = ssub.s32 25600, 25600
      %21 = vsyncadd [#allocation3], %s20
      %s22 = sshll.u32 [#allocation2], 4
      %s23 = int_to_ptr.vmem [resolvable:$true] %s22
      %28 = dma.hbm_to_vmem [thread:$0]  %s1, 25600, %s23, [#allocation3], 512, 512, 32
    $region9: #{tpu_custom_call.1} parent=1 // pred_fallthru
      _
    // Predicated region
    $region10: #{tpu_custom_call.1} parent=1 // pred_check
      _
    $region11: #{tpu_custom_call.1} parent=1 // pred_check_branch
      %30 = sbr.rel (0) target = $region13
    $region12: #{tpu_custom_call.1} parent=1 // pred_region
      _
    $region13: #{tpu_custom_call.1} parent=1 // pred_fallthru
      _
    // Predicated region
    $region14: #{tpu_custom_call.1} parent=1 // pred_check
      _
    $region15: #{tpu_custom_call.1} parent=1 // pred_check_branch
      %32 = sbr.rel (0) target = $region17
    $region16: #{tpu_custom_call.1} parent=1 // pred_region
      %s34 = ssub.s32 16384, 16384
      %35 = vsyncadd [#allocation6], %s34
      %s36 = sshll.u32 [#allocation5], 4
      %s37 = int_to_ptr.vmem [resolvable:$true] %s36
      %42 = dma.hbm_to_vmem [thread:$0]  %s3, 16384, %s37, [#allocation6], 256, 256, 16
    $region17: #{tpu_custom_call.1} parent=1 // pred_fallthru
      _
    // Predicated region
    $region18: #{tpu_custom_call.1} parent=1 // pred_check
      _
    $region19: #{tpu_custom_call.1} parent=1 // pred_check_branch
      %44 = sbr.rel (0) target = $region21
    $region20: #{tpu_custom_call.1} parent=1 // pred_region
      _
    $region21: #{tpu_custom_call.1} parent=1 // pred_fallthru
      _
    // Predicated region
    $region22: #{tpu_custom_call.1} parent=1 // pred_check
      _
    $region23: #{tpu_custom_call.1} parent=1 // pred_check_branch
      %46 = sbr.rel (0) target = $region25
    $region24: #{tpu_custom_call.1} parent=1 // pred_region
      _
    $region25: #{tpu_custom_call.1} parent=1 // pred_fallthru
      _
    // Predicated region
    $region26: #{tpu_custom_call.1} parent=1 // pred_check
      _
    $region27: #{tpu_custom_call.1} parent=1 // pred_check_branch
      %48 = sbr.rel (0) target = $region29
    $region28: #{tpu_custom_call.1} parent=1 // pred_region
      _
    $region29: #{tpu_custom_call.1} parent=1 // pred_fallthru
      _
    // Predicated region
    $region30: #{tpu_custom_call.1} parent=1 // pred_check
      _
    $region31: #{tpu_custom_call.1} parent=1 // pred_check_branch
      %50 = sbr.rel (0) target = $region33
    $region32: #{tpu_custom_call.1} parent=1 // pred_region
      %51 = dma.done [#allocation3], 25600
    $region33: #{tpu_custom_call.1} parent=1 // pred_fallthru
      _
    // Predicated region
    $region34: #{tpu_custom_call.1} parent=1 // pred_check
      _
    $region35: #{tpu_custom_call.1} parent=1 // pred_check_branch
      %53 = sbr.rel (0) target = $region37
    $region36: #{tpu_custom_call.1} parent=1 // pred_region
      %54 = dma.done [#allocation6], 16384
    $region37: #{tpu_custom_call.1} parent=1 // pred_fallthru
      _
    %v55 = vld [vmem:[%s0] sm:$0xf]
    %v56 = vld [vmem:[#allocation2] sm:$0xff]
    %v57 = vld [vmem:[#allocation2 + $0x8] sm:$0xff]
    %v58 = vld [vmem:[#allocation2 + $0x10] sm:$0xff]
    %v59 = vld [vmem:[#allocation2 + $0x18] sm:$0xff]
    %v60 = vld [vmem:[#allocation2 + $0x20] sm:$0xff]
    %v61 = vld [vmem:[#allocation2 + $0x28] sm:$0xff]
    %v62 = vld [vmem:[#allocation2 + $0x30] sm:$0xff]
    %v63 = vld [vmem:[#allocation2 + $0x38] sm:$0xff]
    %v64 = vld [vmem:[#allocation2 + $0x40] sm:$0xff]
    %v65 = vld [vmem:[#allocation2 + $0x48] sm:$0xff]
    %v66 = vld [vmem:[#allocation2 + $0x50] sm:$0xff]
    %v67 = vld [vmem:[#allocation2 + $0x58] sm:$0xff]
    %v68 = vld [vmem:[#allocation2 + $0x60] sm:$0xff]
    %v69 = vld [vmem:[#allocation2 + $0x68] sm:$0xff]
    %v70 = vld [vmem:[#allocation2 + $0x70] sm:$0xff]
    %v71 = vld [vmem:[#allocation2 + $0x78] sm:$0xff]
    %v72 = vld [vmem:[#allocation2 + $0x80] sm:$0xff]
    %v73 = vld [vmem:[#allocation2 + $0x88] sm:$0xff]
    %v74 = vld [vmem:[#allocation2 + $0x90] sm:$0xff]
    %v75 = vld [vmem:[#allocation2 + $0x98] sm:$0xff]
    %v76 = vld [vmem:[#allocation2 + $0xa0] sm:$0xff]
    %v77 = vld [vmem:[#allocation2 + $0xa8] sm:$0xff]
    %v78 = vld [vmem:[#allocation2 + $0xb0] sm:$0xff]
    %v79 = vld [vmem:[#allocation2 + $0xb8] sm:$0xff]
    %v80 = vld [vmem:[#allocation2 + $0xc0] sm:$0xff]
    %v81 = vld [vmem:[#allocation2 + $0xc8] sm:$0xff]
    %v82 = vld [vmem:[#allocation2 + $0xd0] sm:$0xff]
    %v83 = vld [vmem:[#allocation2 + $0xd8] sm:$0xff]
    %v84 = vld [vmem:[#allocation2 + $0xe0] sm:$0xff]
    %v85 = vld [vmem:[#allocation2 + $0xe8] sm:$0xff]
    %v86 = vld [vmem:[#allocation2 + $0xf0] sm:$0xff]
    %v87 = vld [vmem:[#allocation2 + $0xf8] sm:$0xff]
    %v88 = vld [vmem:[#allocation2 + $0x100] sm:$0xff]
    %v89 = vld [vmem:[#allocation2 + $0x108] sm:$0xff]
    %v90 = vld [vmem:[#allocation2 + $0x110] sm:$0xff]
    %v91 = vld [vmem:[#allocation2 + $0x118] sm:$0xff]
    %v92 = vld [vmem:[#allocation2 + $0x120] sm:$0xff]
    %v93 = vld [vmem:[#allocation2 + $0x128] sm:$0xff]
    %v94 = vld [vmem:[#allocation2 + $0x130] sm:$0xff]
    %v95 = vld [vmem:[#allocation2 + $0x138] sm:$0xff]
    %v96 = vld [vmem:[#allocation2 + $0x140] sm:$0xff]
    %v97 = vld [vmem:[#allocation2 + $0x148] sm:$0xff]
    %v98 = vld [vmem:[#allocation2 + $0x150] sm:$0xff]
    %v99 = vld [vmem:[#allocation2 + $0x158] sm:$0xff]
    %v100 = vld [vmem:[#allocation2 + $0x160] sm:$0xff]
    %v101 = vld [vmem:[#allocation2 + $0x168] sm:$0xff]
    %v102 = vld [vmem:[#allocation2 + $0x170] sm:$0xff]
    %v103 = vld [vmem:[#allocation2 + $0x178] sm:$0xff]
    %v104 = vld [vmem:[#allocation2 + $0x180] sm:$0xff]
    %v105 = vld [vmem:[#allocation2 + $0x188] sm:$0xff]
    %v106 = vld [vmem:[#allocation2 + $0x190] sm:$0xff]
    %v107 = vld [vmem:[#allocation2 + $0x198] sm:$0xff]
    %v108 = vld [vmem:[#allocation2 + $0x1a0] sm:$0xff]
    %v109 = vld [vmem:[#allocation2 + $0x1a8] sm:$0xff]
    %v110 = vld [vmem:[#allocation2 + $0x1b0] sm:$0xff]
    %v111 = vld [vmem:[#allocation2 + $0x1b8] sm:$0xff]
    %v112 = vld [vmem:[#allocation2 + $0x1c0] sm:$0xff]
    %v113 = vld [vmem:[#allocation2 + $0x1c8] sm:$0xff]
    %v114 = vld [vmem:[#allocation2 + $0x1d0] sm:$0xff]
    %v115 = vld [vmem:[#allocation2 + $0x1d8] sm:$0xff]
    %v116 = vld [vmem:[#allocation2 + $0x1e0] sm:$0xff]
    %v117 = vld [vmem:[#allocation2 + $0x1e8] sm:$0xff]
    %v118 = vld [vmem:[#allocation2 + $0x1f0] sm:$0xff]
    %v119 = vld [vmem:[#allocation2 + $0x1f8] sm:$0xff]
    %v120 = vld [vmem:[#allocation2 + $0x200] sm:$0xff]
    %v121 = vld [vmem:[#allocation2 + $0x208] sm:$0xff]
    %v122 = vld [vmem:[#allocation2 + $0x210] sm:$0xff]
    %v123 = vld [vmem:[#allocation2 + $0x218] sm:$0xff]
    %v124 = vld [vmem:[#allocation2 + $0x220] sm:$0xff]
    %v125 = vld [vmem:[#allocation2 + $0x228] sm:$0xff]
    %v126 = vld [vmem:[#allocation2 + $0x230] sm:$0xff]
    %v127 = vld [vmem:[#allocation2 + $0x238] sm:$0xff]
    %v128 = vld [vmem:[#allocation2 + $0x240] sm:$0xff]
    %v129 = vld [vmem:[#allocation2 + $0x248] sm:$0xff]
    %v130 = vld [vmem:[#allocation2 + $0x250] sm:$0xff]
    %v131 = vld [vmem:[#allocation2 + $0x258] sm:$0xff]
    %v132 = vld [vmem:[#allocation2 + $0x260] sm:$0xff]
    %v133 = vld [vmem:[#allocation2 + $0x268] sm:$0xff]
    %v134 = vld [vmem:[#allocation2 + $0x270] sm:$0xff]
    %v135 = vld [vmem:[#allocation2 + $0x278] sm:$0xff]
    %v136 = vld [vmem:[#allocation2 + $0x280] sm:$0xff]
    %v137 = vld [vmem:[#allocation2 + $0x288] sm:$0xff]
    %v138 = vld [vmem:[#allocation2 + $0x290] sm:$0xff]
    %v139 = vld [vmem:[#allocation2 + $0x298] sm:$0xff]
    %v140 = vld [vmem:[#allocation2 + $0x2a0] sm:$0xff]
    %v141 = vld [vmem:[#allocation2 + $0x2a8] sm:$0xff]
    %v142 = vld [vmem:[#allocation2 + $0x2b0] sm:$0xff]
    %v143 = vld [vmem:[#allocation2 + $0x2b8] sm:$0xff]
    %v144 = vld [vmem:[#allocation2 + $0x2c0] sm:$0xff]
    %v145 = vld [vmem:[#allocation2 + $0x2c8] sm:$0xff]
    %v146 = vld [vmem:[#allocation2 + $0x2d0] sm:$0xff]
    %v147 = vld [vmem:[#allocation2 + $0x2d8] sm:$0xff]
    %v148 = vld [vmem:[#allocation2 + $0x2e0] sm:$0xff]
    %v149 = vld [vmem:[#allocation2 + $0x2e8] sm:$0xff]
    %v150 = vld [vmem:[#allocation2 + $0x2f0] sm:$0xff]
    %v151 = vld [vmem:[#allocation2 + $0x2f8] sm:$0xff]
    %v152 = vld [vmem:[#allocation2 + $0x300] sm:$0xff]
    %v153 = vld [vmem:[#allocation2 + $0x308] sm:$0xff]
    %v154 = vld [vmem:[#allocation2 + $0x310] sm:$0xff]
    %v155 = vld [vmem:[#allocation2 + $0x318] sm:$0xff]
    %v156 = vld [vmem:[#allocation2 + $0x320] sm:$0xff]
    %v157 = vld [vmem:[#allocation2 + $0x328] sm:$0xff]
    %v158 = vld [vmem:[#allocation2 + $0x330] sm:$0xff]
    %v159 = vld [vmem:[#allocation2 + $0x338] sm:$0xff]
    %v160 = vld [vmem:[#allocation2 + $0x340] sm:$0xff]
    %v161 = vld [vmem:[#allocation2 + $0x348] sm:$0xff]
    %v162 = vld [vmem:[#allocation2 + $0x350] sm:$0xff]
    %v163 = vld [vmem:[#allocation2 + $0x358] sm:$0xff]
    %v164 = vld [vmem:[#allocation2 + $0x360] sm:$0xff]
    %v165 = vld [vmem:[#allocation2 + $0x368] sm:$0xff]
    %v166 = vld [vmem:[#allocation2 + $0x370] sm:$0xff]
    %v167 = vld [vmem:[#allocation2 + $0x378] sm:$0xff]
    %v168 = vld [vmem:[#allocation2 + $0x380] sm:$0xff]
    %v169 = vld [vmem:[#allocation2 + $0x388] sm:$0xff]
    %v170 = vld [vmem:[#allocation2 + $0x390] sm:$0xff]
    %v171 = vld [vmem:[#allocation2 + $0x398] sm:$0xff]
    %v172 = vld [vmem:[#allocation2 + $0x3a0] sm:$0xff]
    %v173 = vld [vmem:[#allocation2 + $0x3a8] sm:$0xff]
    %v174 = vld [vmem:[#allocation2 + $0x3b0] sm:$0xff]
    %v175 = vld [vmem:[#allocation2 + $0x3b8] sm:$0xff]
    %v176 = vld [vmem:[#allocation2 + $0x3c0] sm:$0xff]
    %v177 = vld [vmem:[#allocation2 + $0x3c8] sm:$0xff]
    %v178 = vld [vmem:[#allocation2 + $0x3d0] sm:$0xff]
    %v179 = vld [vmem:[#allocation2 + $0x3d8] sm:$0xff]
    %v180 = vld [vmem:[#allocation2 + $0x3e0] sm:$0xff]
    %v181 = vld [vmem:[#allocation2 + $0x3e8] sm:$0xff]
    %v182 = vld [vmem:[#allocation2 + $0x3f0] sm:$0xff]
    %v183 = vld [vmem:[#allocation2 + $0x3f8] sm:$0xff]
    %v184 = vld [vmem:[#allocation2 + $0x400] sm:$0xff]
    %v185 = vld [vmem:[#allocation2 + $0x408] sm:$0xff]
    %v186 = vld [vmem:[#allocation2 + $0x410] sm:$0xff]
    %v187 = vld [vmem:[#allocation2 + $0x418] sm:$0xff]
    %v188 = vld [vmem:[#allocation2 + $0x420] sm:$0xff]
    %v189 = vld [vmem:[#allocation2 + $0x428] sm:$0xff]
    %v190 = vld [vmem:[#allocation2 + $0x430] sm:$0xff]
    %v191 = vld [vmem:[#allocation2 + $0x438] sm:$0xff]
    %v192 = vld [vmem:[#allocation2 + $0x440] sm:$0xff]
    %v193 = vld [vmem:[#allocation2 + $0x448] sm:$0xff]
    %v194 = vld [vmem:[#allocation2 + $0x450] sm:$0xff]
    %v195 = vld [vmem:[#allocation2 + $0x458] sm:$0xff]
    %v196 = vld [vmem:[#allocation2 + $0x460] sm:$0xff]
    %v197 = vld [vmem:[#allocation2 + $0x468] sm:$0xff]
    %v198 = vld [vmem:[#allocation2 + $0x470] sm:$0xff]
    %v199 = vld [vmem:[#allocation2 + $0x478] sm:$0xff]
    %v200 = vld [vmem:[#allocation2 + $0x480] sm:$0xff]
    %v201 = vld [vmem:[#allocation2 + $0x488] sm:$0xff]
    %v202 = vld [vmem:[#allocation2 + $0x490] sm:$0xff]
    %v203 = vld [vmem:[#allocation2 + $0x498] sm:$0xff]
    %v204 = vld [vmem:[#allocation2 + $0x4a0] sm:$0xff]
    %v205 = vld [vmem:[#allocation2 + $0x4a8] sm:$0xff]
    %v206 = vld [vmem:[#allocation2 + $0x4b0] sm:$0xff]
    %v207 = vld [vmem:[#allocation2 + $0x4b8] sm:$0xff]
    %v208 = vld [vmem:[#allocation2 + $0x4c0] sm:$0xff]
    %v209 = vld [vmem:[#allocation2 + $0x4c8] sm:$0xff]
    %v210 = vld [vmem:[#allocation2 + $0x4d0] sm:$0xff]
    %v211 = vld [vmem:[#allocation2 + $0x4d8] sm:$0xff]
    %v212 = vld [vmem:[#allocation2 + $0x4e0] sm:$0xff]
    %v213 = vld [vmem:[#allocation2 + $0x4e8] sm:$0xff]
    %v214 = vld [vmem:[#allocation2 + $0x4f0] sm:$0xff]
    %v215 = vld [vmem:[#allocation2 + $0x4f8] sm:$0xff]
    %v216 = vld [vmem:[#allocation2 + $0x500] sm:$0xff]
    %v217 = vld [vmem:[#allocation2 + $0x508] sm:$0xff]
    %v218 = vld [vmem:[#allocation2 + $0x510] sm:$0xff]
    %v219 = vld [vmem:[#allocation2 + $0x518] sm:$0xff]
    %v220 = vld [vmem:[#allocation2 + $0x520] sm:$0xff]
    %v221 = vld [vmem:[#allocation2 + $0x528] sm:$0xff]
    %v222 = vld [vmem:[#allocation2 + $0x530] sm:$0xff]
    %v223 = vld [vmem:[#allocation2 + $0x538] sm:$0xff]
    %v224 = vld [vmem:[#allocation2 + $0x540] sm:$0xff]
    %v225 = vld [vmem:[#allocation2 + $0x548] sm:$0xff]
    %v226 = vld [vmem:[#allocation2 + $0x550] sm:$0xff]
    %v227 = vld [vmem:[#allocation2 + $0x558] sm:$0xff]
    %v228 = vld [vmem:[#allocation2 + $0x560] sm:$0xff]
    %v229 = vld [vmem:[#allocation2 + $0x568] sm:$0xff]
    %v230 = vld [vmem:[#allocation2 + $0x570] sm:$0xff]
    %v231 = vld [vmem:[#allocation2 + $0x578] sm:$0xff]
    %v232 = vld [vmem:[#allocation2 + $0x580] sm:$0xff]
    %v233 = vld [vmem:[#allocation2 + $0x588] sm:$0xff]
    %v234 = vld [vmem:[#allocation2 + $0x590] sm:$0xff]
    %v235 = vld [vmem:[#allocation2 + $0x598] sm:$0xff]
    %v236 = vld [vmem:[#allocation2 + $0x5a0] sm:$0xff]
    %v237 = vld [vmem:[#allocation2 + $0x5a8] sm:$0xff]
    %v238 = vld [vmem:[#allocation2 + $0x5b0] sm:$0xff]
    %v239 = vld [vmem:[#allocation2 + $0x5b8] sm:$0xff]
    %v240 = vld [vmem:[#allocation2 + $0x5c0] sm:$0xff]
    %v241 = vld [vmem:[#allocation2 + $0x5c8] sm:$0xff]
    %v242 = vld [vmem:[#allocation2 + $0x5d0] sm:$0xff]
    %v243 = vld [vmem:[#allocation2 + $0x5d8] sm:$0xff]
    %v244 = vld [vmem:[#allocation2 + $0x5e0] sm:$0xff]
    %v245 = vld [vmem:[#allocation2 + $0x5e8] sm:$0xff]
    %v246 = vld [vmem:[#allocation2 + $0x5f0] sm:$0xff]
    %v247 = vld [vmem:[#allocation2 + $0x5f8] sm:$0xff]
    %v248 = vld [vmem:[#allocation2 + $0x600] sm:$0xff]
    %v249 = vld [vmem:[#allocation2 + $0x608] sm:$0xff]
    %v250 = vld [vmem:[#allocation2 + $0x610] sm:$0xff]
    %v251 = vld [vmem:[#allocation2 + $0x618] sm:$0xff]
    %v252 = vld [vmem:[#allocation2 + $0x620] sm:$0xff]
    %v253 = vld [vmem:[#allocation2 + $0x628] sm:$0xff]
    %v254 = vld [vmem:[#allocation2 + $0x630] sm:$0xff]
    %v255 = vld [vmem:[#allocation2 + $0x638] sm:$0xff]
    %v256 = vld [vmem:[%s2] sm:$0xf]
    %v258 = vlaneseq
    %v259 = vshrl.u32 %v258, 7
    %v260 = vsub.s32 0, %v259
    %v261 = vrot.slane %v55, %v260
    %v262 = vlaneseq
    %v263 = vshrl.u32 %v262, 7
    %v264 = vsub.s32 1, %v263
    %v265 = vrot.slane %v55, %v264
    %v266 = vlaneseq
    %v267 = vshrl.u32 %v266, 7
    %v268 = vsub.s32 2, %v267
    %v269 = vrot.slane %v55, %v268
    %v270 = vlaneseq
    %v271 = vshrl.u32 %v270, 7
    %v272 = vsub.s32 3, %v271
    %v273 = vrot.slane %v55, %v272
    %v278 = vlaneseq
    %v279 = vshrl.u32 %v278, 7
    %v280 = vsub.s32 0, %v279
    %v281 = vrot.slane %v256, %v280
    %v282 = vlaneseq
    %v283 = vshrl.u32 %v282, 7
    %v284 = vsub.s32 1, %v283
    %v285 = vrot.slane %v256, %v284
    %v286 = vlaneseq
    %v287 = vshrl.u32 %v286, 7
    %v288 = vsub.s32 2, %v287
    %v289 = vrot.slane %v256, %v288
    %v290 = vlaneseq
    %v291 = vshrl.u32 %v290, 7
    %v292 = vsub.s32 3, %v291
    %v293 = vrot.slane %v256, %v292
    %vm298 = vcmask 130048
    %v299 = vsel %vm298, %v273, 0
    %301 = vmatprep.subr.mxu0 %v57
    %302 = vmatpush1.msra.mxu0 %v56
    %303 = vmatprep.subr.mxu0 %v61
    %304 = vmatpush1.msra.mxu0 %v60
    %305 = vmatprep.subr.mxu0 %v65
    %306 = vmatpush1.msra.mxu0 %v64
    %307 = vmatprep.subr.mxu0 %v69
    %308 = vmatpush1.msra.mxu0 %v68
    %309 = vmatprep.subr.mxu0 %v73
    %310 = vmatpush1.msra.mxu0 %v72
    %311 = vmatprep.subr.mxu0 %v77
    %312 = vmatpush1.msra.mxu0 %v76
    %313 = vmatprep.subr.mxu0 %v81
    %314 = vmatpush1.msra.mxu0 %v80
    %315 = vmatprep.subr.mxu0 %v85
    %316 = vmatpush1.msra.mxu0 %v84
    %317 = vmatprep.subr.mxu0 %v89
    %318 = vmatpush1.msra.mxu0 %v88
    %319 = vmatprep.subr.mxu0 %v93
    %320 = vmatpush1.msra.mxu0 %v92
    %321 = vmatprep.subr.mxu0 %v97
    %322 = vmatpush1.msra.mxu0 %v96
    %323 = vmatprep.subr.mxu0 %v101
    %324 = vmatpush1.msra.mxu0 %v100
    %325 = vmatprep.subr.mxu0 %v105
    %326 = vmatpush1.msra.mxu0 %v104
    %327 = vmatprep.subr.mxu0 %v109
    %328 = vmatpush1.msra.mxu0 %v108
    %329 = vmatprep.subr.mxu0 %v113
    %330 = vmatpush1.msra.mxu0 %v112
    %331 = vmatprep.subr.mxu0 %v117
    %332 = vmatpush1.msra.mxu0 %v116
    %333 = vmatprep.subr.mxu0 %v121
    %334 = vmatpush1.msra.mxu0 %v120
    %335 = vmatprep.subr.mxu0 %v125
    %336 = vmatpush1.msra.mxu0 %v124
    %337 = vmatprep.subr.mxu0 %v129
    %338 = vmatpush1.msra.mxu0 %v128
    %339 = vmatprep.subr.mxu0 %v133
    %340 = vmatpush1.msra.mxu0 %v132
    %341 = vmatprep.subr.mxu0 %v137
    %342 = vmatpush1.msra.mxu0 %v136
    %343 = vmatprep.subr.mxu0 %v141
    %344 = vmatpush1.msra.mxu0 %v140
    %345 = vmatprep.subr.mxu0 %v145
    %346 = vmatpush1.msra.mxu0 %v144
    %347 = vmatprep.subr.mxu0 %v149
    %348 = vmatpush1.msra.mxu0 %v148
    %349 = vmatprep.subr.mxu0 %v153
    %350 = vmatpush1.msra.mxu0 %v152
    %351 = vmatprep.subr.mxu0 %v157
    %352 = vmatpush1.msra.mxu0 %v156
    %353 = vmatprep.subr.mxu0 %v161
    %354 = vmatpush1.msra.mxu0 %v160
    %355 = vmatprep.subr.mxu0 %v165
    %356 = vmatpush1.msra.mxu0 %v164
    %357 = vmatprep.subr.mxu0 %v169
    %358 = vmatpush1.msra.mxu0 %v168
    %359 = vmatprep.subr.mxu0 %v173
    %360 = vmatpush1.msra.mxu0 %v172
    %361 = vmatprep.subr.mxu0 %v177
    %362 = vmatpush1.msra.mxu0 %v176
    %363 = vmatprep.subr.mxu0 %v181
    %364 = vmatpush1.msra.mxu0 %v180
    %365 = vmatprep.mubr.f32.mxu0 %v265
    %366 = vmatmul.mubr.f32.gmra.mrb[0].mxu0 %v261
    %v367 = vpop.f32.mrb[0].mxu0
    %v368 = vadd.f32 %v281, %v367
    %v369 = vpop.f32.mrb[0].mxu0
    %v370 = vadd.f32 %v285, %v369
    %371 = vdwg.mxu0
    %372 = vmatprep.subr.mxu0 %v185
    %373 = vmatpush1.msra.mxu0 %v184
    %374 = vmatprep.subr.mxu0 %v189
    %375 = vmatpush1.msra.mxu0 %v188
    %376 = vmatprep.subr.mxu0 %v193
    %377 = vmatpush1.msra.mxu0 %v192
    %378 = vmatprep.subr.mxu0 %v197
    %379 = vmatpush1.msra.mxu0 %v196
    %380 = vmatprep.subr.mxu0 %v201
    %381 = vmatpush1.msra.mxu0 %v200
    %382 = vmatprep.subr.mxu0 %v205
    %383 = vmatpush1.msra.mxu0 %v204
    %384 = vmatprep.subr.mxu0 %v209
    %385 = vmatpush1.msra.mxu0 %v208
    %386 = vmatprep.subr.mxu0 %v213
    %387 = vmatpush1.msra.mxu0 %v212
    %388 = vmatprep.subr.mxu0 %v217
    %389 = vmatpush1.msra.mxu0 %v216
    %390 = vmatprep.subr.mxu0 %v221
    %391 = vmatpush1.msra.mxu0 %v220
    %392 = vmatprep.subr.mxu0 %v225
    %393 = vmatpush1.msra.mxu0 %v224
    %394 = vmatprep.subr.mxu0 %v229
    %395 = vmatpush1.msra.mxu0 %v228
    %396 = vmatprep.subr.mxu0 %v233
    %397 = vmatpush1.msra.mxu0 %v232
    %398 = vmatprep.subr.mxu0 %v237
    %399 = vmatpush1.msra.mxu0 %v236
    %400 = vmatprep.subr.mxu0 %v241
    %401 = vmatpush1.msra.mxu0 %v240
    %402 = vmatprep.subr.mxu0 %v245
    %403 = vmatpush1.msra.mxu0 %v244
    %404 = vmatprep.subr.mxu0 %v249
    %405 = vmatpush1.msra.mxu0 %v248
    %406 = vmatprep.subr.mxu0 %v253
    %407 = vmatpush1.msra.mxu0 %v252
    %408 = vmatprep.subr.mxu0 0.0
    %409 = vmatpush1.msra.mxu0 0.0
    %410 = vmatprep.subr.mxu0 0.0
    %411 = vmatpush1.msra.mxu0 0.0
    %412 = vmatprep.subr.mxu0 0.0
    %413 = vmatpush1.msra.mxu0 0.0
    %414 = vmatprep.subr.mxu0 0.0
    %415 = vmatpush1.msra.mxu0 0.0
    %416 = vmatprep.subr.mxu0 0.0
    %417 = vmatpush1.msra.mxu0 0.0
    %418 = vmatprep.subr.mxu0 0.0
    %419 = vmatpush1.msra.mxu0 0.0
    %420 = vmatprep.subr.mxu0 0.0
    %421 = vmatpush1.msra.mxu0 0.0
    %422 = vmatprep.subr.mxu0 0.0
    %423 = vmatpush1.msra.mxu0 0.0
    %424 = vmatprep.subr.mxu0 0.0
    %425 = vmatpush1.msra.mxu0 0.0
    %426 = vmatprep.subr.mxu0 0.0
    %427 = vmatpush1.msra.mxu0 0.0
    %428 = vmatprep.subr.mxu0 0.0
    %429 = vmatpush1.msra.mxu0 0.0
    %430 = vmatprep.subr.mxu0 0.0
    %431 = vmatpush1.msra.mxu0 0.0
    %432 = vmatprep.subr.mxu0 0.0
    %433 = vmatpush1.msra.mxu0 0.0
    %434 = vmatprep.subr.mxu0 0.0
    %435 = vmatpush1.msra.mxu0 0.0
    %436 = vmatprep.mubr.f32.mxu0 %v299
    %437 = vmatmul.mubr.f32.gmra.mrb[0].mxu0 %v269
    %v438 = vpop.f32.mrb[0].mxu0
    %v439 = vadd.f32 %v368, %v438
    %v440 = vpop.f32.mrb[0].mxu0
    %v441 = vadd.f32 %v370, %v440
    %442 = vdwg.mxu0
    %443 = vmatprep.subr.mxu0 %v59
    %444 = vmatpush1.msra.mxu0 %v58
    %445 = vmatprep.subr.mxu0 %v63
    %446 = vmatpush1.msra.mxu0 %v62
    %447 = vmatprep.subr.mxu0 %v67
    %448 = vmatpush1.msra.mxu0 %v66
    %449 = vmatprep.subr.mxu0 %v71
    %450 = vmatpush1.msra.mxu0 %v70
    %451 = vmatprep.subr.mxu0 %v75
    %452 = vmatpush1.msra.mxu0 %v74
    %453 = vmatprep.subr.mxu0 %v79
    %454 = vmatpush1.msra.mxu0 %v78
    %455 = vmatprep.subr.mxu0 %v83
    %456 = vmatpush1.msra.mxu0 %v82
    %457 = vmatprep.subr.mxu0 %v87
    %458 = vmatpush1.msra.mxu0 %v86
    %459 = vmatprep.subr.mxu0 %v91
    %460 = vmatpush1.msra.mxu0 %v90
    %461 = vmatprep.subr.mxu0 %v95
    %462 = vmatpush1.msra.mxu0 %v94
    %463 = vmatprep.subr.mxu0 %v99
    %464 = vmatpush1.msra.mxu0 %v98
    %465 = vmatprep.subr.mxu0 %v103
    %466 = vmatpush1.msra.mxu0 %v102
    %467 = vmatprep.subr.mxu0 %v107
    %468 = vmatpush1.msra.mxu0 %v106
    %469 = vmatprep.subr.mxu0 %v111
    %470 = vmatpush1.msra.mxu0 %v110
    %471 = vmatprep.subr.mxu0 %v115
    %472 = vmatpush1.msra.mxu0 %v114
    %473 = vmatprep.subr.mxu0 %v119
    %474 = vmatpush1.msra.mxu0 %v118
    %475 = vmatprep.subr.mxu0 %v123
    %476 = vmatpush1.msra.mxu0 %v122
    %477 = vmatprep.subr.mxu0 %v127
    %478 = vmatpush1.msra.mxu0 %v126
    %479 = vmatprep.subr.mxu0 %v131
    %480 = vmatpush1.msra.mxu0 %v130
    %481 = vmatprep.subr.mxu0 %v135
    %482 = vmatpush1.msra.mxu0 %v134
    %483 = vmatprep.subr.mxu0 %v139
    %484 = vmatpush1.msra.mxu0 %v138
    %485 = vmatprep.subr.mxu0 %v143
    %486 = vmatpush1.msra.mxu0 %v142
    %487 = vmatprep.subr.mxu0 %v147
    %488 = vmatpush1.msra.mxu0 %v146
    %489 = vmatprep.subr.mxu0 %v151
    %490 = vmatpush1.msra.mxu0 %v150
    %491 = vmatprep.subr.mxu0 %v155
    %492 = vmatpush1.msra.mxu0 %v154
    %493 = vmatprep.subr.mxu0 %v159
    %494 = vmatpush1.msra.mxu0 %v158
    %495 = vmatprep.subr.mxu0 %v163
    %496 = vmatpush1.msra.mxu0 %v162
    %497 = vmatprep.subr.mxu0 %v167
    %498 = vmatpush1.msra.mxu0 %v166
    %499 = vmatprep.subr.mxu0 %v171
    %500 = vmatpush1.msra.mxu0 %v170
    %501 = vmatprep.subr.mxu0 %v175
    %502 = vmatpush1.msra.mxu0 %v174
    %503 = vmatprep.subr.mxu0 %v179
    %504 = vmatpush1.msra.mxu0 %v178
    %505 = vmatprep.subr.mxu0 %v183
    %506 = vmatpush1.msra.mxu0 %v182
    %507 = vmatprep.mubr.f32.mxu0 %v265
    %508 = vmatmul.mubr.f32.gmra.mrb[0].mxu0 %v261
    %v509 = vpop.f32.mrb[0].mxu0
    %v510 = vadd.f32 %v289, %v509
    %v511 = vpop.f32.mrb[0].mxu0
    %v512 = vadd.f32 %v293, %v511
    %513 = vdwg.mxu0
    %514 = vmatprep.subr.mxu0 %v187
    %515 = vmatpush1.msra.mxu0 %v186
    %516 = vmatprep.subr.mxu0 %v191
    %517 = vmatpush1.msra.mxu0 %v190
    %518 = vmatprep.subr.mxu0 %v195
    %519 = vmatpush1.msra.mxu0 %v194
    %520 = vmatprep.subr.mxu0 %v199
    %521 = vmatpush1.msra.mxu0 %v198
    %522 = vmatprep.subr.mxu0 %v203
    %523 = vmatpush1.msra.mxu0 %v202
    %524 = vmatprep.subr.mxu0 %v207
    %525 = vmatpush1.msra.mxu0 %v206
    %526 = vmatprep.subr.mxu0 %v211
    %527 = vmatpush1.msra.mxu0 %v210
    %528 = vmatprep.subr.mxu0 %v215
    %529 = vmatpush1.msra.mxu0 %v214
    %530 = vmatprep.subr.mxu0 %v219
    %531 = vmatpush1.msra.mxu0 %v218
    %532 = vmatprep.subr.mxu0 %v223
    %533 = vmatpush1.msra.mxu0 %v222
    %534 = vmatprep.subr.mxu0 %v227
    %535 = vmatpush1.msra.mxu0 %v226
    %536 = vmatprep.subr.mxu0 %v231
    %537 = vmatpush1.msra.mxu0 %v230
    %538 = vmatprep.subr.mxu0 %v235
    %539 = vmatpush1.msra.mxu0 %v234
    %540 = vmatprep.subr.mxu0 %v239
    %541 = vmatpush1.msra.mxu0 %v238
    %542 = vmatprep.subr.mxu0 %v243
    %543 = vmatpush1.msra.mxu0 %v242
    %544 = vmatprep.subr.mxu0 %v247
    %545 = vmatpush1.msra.mxu0 %v246
    %546 = vmatprep.subr.mxu0 %v251
    %547 = vmatpush1.msra.mxu0 %v250
    %548 = vmatprep.subr.mxu0 %v255
    %549 = vmatpush1.msra.mxu0 %v254
    %550 = vmatprep.subr.mxu0 0.0
    %551 = vmatpush1.msra.mxu0 0.0
    %552 = vmatprep.subr.mxu0 0.0
    %553 = vmatpush1.msra.mxu0 0.0
    %554 = vmatprep.subr.mxu0 0.0
    %555 = vmatpush1.msra.mxu0 0.0
    %556 = vmatprep.subr.mxu0 0.0
    %557 = vmatpush1.msra.mxu0 0.0
    %558 = vmatprep.subr.mxu0 0.0
    %559 = vmatpush1.msra.mxu0 0.0
    %560 = vmatprep.subr.mxu0 0.0
    %561 = vmatpush1.msra.mxu0 0.0
    %562 = vmatprep.subr.mxu0 0.0
    %563 = vmatpush1.msra.mxu0 0.0
    %564 = vmatprep.subr.mxu0 0.0
    %565 = vmatpush1.msra.mxu0 0.0
    %566 = vmatprep.subr.mxu0 0.0
    %567 = vmatpush1.msra.mxu0 0.0
    %568 = vmatprep.subr.mxu0 0.0
    %569 = vmatpush1.msra.mxu0 0.0
    %570 = vmatprep.subr.mxu0 0.0
    %571 = vmatpush1.msra.mxu0 0.0
    %572 = vmatprep.subr.mxu0 0.0
    %573 = vmatpush1.msra.mxu0 0.0
    %574 = vmatprep.subr.mxu0 0.0
    %575 = vmatpush1.msra.mxu0 0.0
    %576 = vmatprep.subr.mxu0 0.0
    %577 = vmatpush1.msra.mxu0 0.0
    %578 = vmatprep.mubr.f32.mxu0 %v299
    %579 = vmatmul.mubr.f32.gmra.mrb[0].mxu0 %v269
    %v580 = vpop.f32.mrb[0].mxu0
    %v581 = vadd.f32 %v510, %v580
    %v582 = vpop.f32.mrb[0].mxu0
    %v583 = vadd.f32 %v512, %v582
    %584 = vdwg.mxu0
    %v585 = vmax.f32 %v439, 0.0
    %v586 = vmax.f32 %v441, 0.0
    %v587 = vmax.f32 %v581, 0.0
    %v588 = vmax.f32 %v583, 0.0
    %v589 = vld [vmem:[#allocation5] sm:$0xff]
    %v590 = vld [vmem:[#allocation5 + $0x8] sm:$0xff]
    %v591 = vld [vmem:[#allocation5 + $0x10] sm:$0xff]
    %v592 = vld [vmem:[#allocation5 + $0x18] sm:$0xff]
    %v593 = vld [vmem:[#allocation5 + $0x20] sm:$0xff]
    %v594 = vld [vmem:[#allocation5 + $0x28] sm:$0xff]
    %v595 = vld [vmem:[#allocation5 + $0x30] sm:$0xff]
    %v596 = vld [vmem:[#allocation5 + $0x38] sm:$0xff]
    %v597 = vld [vmem:[#allocation5 + $0x40] sm:$0xff]
    %v598 = vld [vmem:[#allocation5 + $0x48] sm:$0xff]
    %v599 = vld [vmem:[#allocation5 + $0x50] sm:$0xff]
    %v600 = vld [vmem:[#allocation5 + $0x58] sm:$0xff]
    %v601 = vld [vmem:[#allocation5 + $0x60] sm:$0xff]
    %v602 = vld [vmem:[#allocation5 + $0x68] sm:$0xff]
    %v603 = vld [vmem:[#allocation5 + $0x70] sm:$0xff]
    %v604 = vld [vmem:[#allocation5 + $0x78] sm:$0xff]
    %v605 = vld [vmem:[#allocation5 + $0x80] sm:$0xff]
    %v606 = vld [vmem:[#allocation5 + $0x88] sm:$0xff]
    %v607 = vld [vmem:[#allocation5 + $0x90] sm:$0xff]
    %v608 = vld [vmem:[#allocation5 + $0x98] sm:$0xff]
    %v609 = vld [vmem:[#allocation5 + $0xa0] sm:$0xff]
    %v610 = vld [vmem:[#allocation5 + $0xa8] sm:$0xff]
    %v611 = vld [vmem:[#allocation5 + $0xb0] sm:$0xff]
    %v612 = vld [vmem:[#allocation5 + $0xb8] sm:$0xff]
    %v613 = vld [vmem:[#allocation5 + $0xc0] sm:$0xff]
    %v614 = vld [vmem:[#allocation5 + $0xc8] sm:$0xff]
    %v615 = vld [vmem:[#allocation5 + $0xd0] sm:$0xff]
    %v616 = vld [vmem:[#allocation5 + $0xd8] sm:$0xff]
    %v617 = vld [vmem:[#allocation5 + $0xe0] sm:$0xff]
    %v618 = vld [vmem:[#allocation5 + $0xe8] sm:$0xff]
    %v619 = vld [vmem:[#allocation5 + $0xf0] sm:$0xff]
    %v620 = vld [vmem:[#allocation5 + $0xf8] sm:$0xff]
    %v621 = vld [vmem:[#allocation5 + $0x100] sm:$0xff]
    %v622 = vld [vmem:[#allocation5 + $0x108] sm:$0xff]
    %v623 = vld [vmem:[#allocation5 + $0x110] sm:$0xff]
    %v624 = vld [vmem:[#allocation5 + $0x118] sm:$0xff]
    %v625 = vld [vmem:[#allocation5 + $0x120] sm:$0xff]
    %v626 = vld [vmem:[#allocation5 + $0x128] sm:$0xff]
    %v627 = vld [vmem:[#allocation5 + $0x130] sm:$0xff]
    %v628 = vld [vmem:[#allocation5 + $0x138] sm:$0xff]
    %v629 = vld [vmem:[#allocation5 + $0x140] sm:$0xff]
    %v630 = vld [vmem:[#allocation5 + $0x148] sm:$0xff]
    %v631 = vld [vmem:[#allocation5 + $0x150] sm:$0xff]
    %v632 = vld [vmem:[#allocation5 + $0x158] sm:$0xff]
    %v633 = vld [vmem:[#allocation5 + $0x160] sm:$0xff]
    %v634 = vld [vmem:[#allocation5 + $0x168] sm:$0xff]
    %v635 = vld [vmem:[#allocation5 + $0x170] sm:$0xff]
    %v636 = vld [vmem:[#allocation5 + $0x178] sm:$0xff]
    %v637 = vld [vmem:[#allocation5 + $0x180] sm:$0xff]
    %v638 = vld [vmem:[#allocation5 + $0x188] sm:$0xff]
    %v639 = vld [vmem:[#allocation5 + $0x190] sm:$0xff]
    %v640 = vld [vmem:[#allocation5 + $0x198] sm:$0xff]
    %v641 = vld [vmem:[#allocation5 + $0x1a0] sm:$0xff]
    %v642 = vld [vmem:[#allocation5 + $0x1a8] sm:$0xff]
    %v643 = vld [vmem:[#allocation5 + $0x1b0] sm:$0xff]
    %v644 = vld [vmem:[#allocation5 + $0x1b8] sm:$0xff]
    %v645 = vld [vmem:[#allocation5 + $0x1c0] sm:$0xff]
    %v646 = vld [vmem:[#allocation5 + $0x1c8] sm:$0xff]
    %v647 = vld [vmem:[#allocation5 + $0x1d0] sm:$0xff]
    %v648 = vld [vmem:[#allocation5 + $0x1d8] sm:$0xff]
    %v649 = vld [vmem:[#allocation5 + $0x1e0] sm:$0xff]
    %v650 = vld [vmem:[#allocation5 + $0x1e8] sm:$0xff]
    %v651 = vld [vmem:[#allocation5 + $0x1f0] sm:$0xff]
    %v652 = vld [vmem:[#allocation5 + $0x1f8] sm:$0xff]
    %v653 = vld [vmem:[#allocation5 + $0x200] sm:$0xff]
    %v654 = vld [vmem:[#allocation5 + $0x208] sm:$0xff]
    %v655 = vld [vmem:[#allocation5 + $0x210] sm:$0xff]
    %v656 = vld [vmem:[#allocation5 + $0x218] sm:$0xff]
    %v657 = vld [vmem:[#allocation5 + $0x220] sm:$0xff]
    %v658 = vld [vmem:[#allocation5 + $0x228] sm:$0xff]
    %v659 = vld [vmem:[#allocation5 + $0x230] sm:$0xff]
    %v660 = vld [vmem:[#allocation5 + $0x238] sm:$0xff]
    %v661 = vld [vmem:[#allocation5 + $0x240] sm:$0xff]
    %v662 = vld [vmem:[#allocation5 + $0x248] sm:$0xff]
    %v663 = vld [vmem:[#allocation5 + $0x250] sm:$0xff]
    %v664 = vld [vmem:[#allocation5 + $0x258] sm:$0xff]
    %v665 = vld [vmem:[#allocation5 + $0x260] sm:$0xff]
    %v666 = vld [vmem:[#allocation5 + $0x268] sm:$0xff]
    %v667 = vld [vmem:[#allocation5 + $0x270] sm:$0xff]
    %v668 = vld [vmem:[#allocation5 + $0x278] sm:$0xff]
    %v669 = vld [vmem:[#allocation5 + $0x280] sm:$0xff]
    %v670 = vld [vmem:[#allocation5 + $0x288] sm:$0xff]
    %v671 = vld [vmem:[#allocation5 + $0x290] sm:$0xff]
    %v672 = vld [vmem:[#allocation5 + $0x298] sm:$0xff]
    %v673 = vld [vmem:[#allocation5 + $0x2a0] sm:$0xff]
    %v674 = vld [vmem:[#allocation5 + $0x2a8] sm:$0xff]
    %v675 = vld [vmem:[#allocation5 + $0x2b0] sm:$0xff]
    %v676 = vld [vmem:[#allocation5 + $0x2b8] sm:$0xff]
    %v677 = vld [vmem:[#allocation5 + $0x2c0] sm:$0xff]
    %v678 = vld [vmem:[#allocation5 + $0x2c8] sm:$0xff]
    %v679 = vld [vmem:[#allocation5 + $0x2d0] sm:$0xff]
    %v680 = vld [vmem:[#allocation5 + $0x2d8] sm:$0xff]
    %v681 = vld [vmem:[#allocation5 + $0x2e0] sm:$0xff]
    %v682 = vld [vmem:[#allocation5 + $0x2e8] sm:$0xff]
    %v683 = vld [vmem:[#allocation5 + $0x2f0] sm:$0xff]
    %v684 = vld [vmem:[#allocation5 + $0x2f8] sm:$0xff]
    %v685 = vld [vmem:[#allocation5 + $0x300] sm:$0xff]
    %v686 = vld [vmem:[#allocation5 + $0x308] sm:$0xff]
    %v687 = vld [vmem:[#allocation5 + $0x310] sm:$0xff]
    %v688 = vld [vmem:[#allocation5 + $0x318] sm:$0xff]
    %v689 = vld [vmem:[#allocation5 + $0x320] sm:$0xff]
    %v690 = vld [vmem:[#allocation5 + $0x328] sm:$0xff]
    %v691 = vld [vmem:[#allocation5 + $0x330] sm:$0xff]
    %v692 = vld [vmem:[#allocation5 + $0x338] sm:$0xff]
    %v693 = vld [vmem:[#allocation5 + $0x340] sm:$0xff]
    %v694 = vld [vmem:[#allocation5 + $0x348] sm:$0xff]
    %v695 = vld [vmem:[#allocation5 + $0x350] sm:$0xff]
    %v696 = vld [vmem:[#allocation5 + $0x358] sm:$0xff]
    %v697 = vld [vmem:[#allocation5 + $0x360] sm:$0xff]
    %v698 = vld [vmem:[#allocation5 + $0x368] sm:$0xff]
    %v699 = vld [vmem:[#allocation5 + $0x370] sm:$0xff]
    %v700 = vld [vmem:[#allocation5 + $0x378] sm:$0xff]
    %v701 = vld [vmem:[#allocation5 + $0x380] sm:$0xff]
    %v702 = vld [vmem:[#allocation5 + $0x388] sm:$0xff]
    %v703 = vld [vmem:[#allocation5 + $0x390] sm:$0xff]
    %v704 = vld [vmem:[#allocation5 + $0x398] sm:$0xff]
    %v705 = vld [vmem:[#allocation5 + $0x3a0] sm:$0xff]
    %v706 = vld [vmem:[#allocation5 + $0x3a8] sm:$0xff]
    %v707 = vld [vmem:[#allocation5 + $0x3b0] sm:$0xff]
    %v708 = vld [vmem:[#allocation5 + $0x3b8] sm:$0xff]
    %v709 = vld [vmem:[#allocation5 + $0x3c0] sm:$0xff]
    %v710 = vld [vmem:[#allocation5 + $0x3c8] sm:$0xff]
    %v711 = vld [vmem:[#allocation5 + $0x3d0] sm:$0xff]
    %v712 = vld [vmem:[#allocation5 + $0x3d8] sm:$0xff]
    %v713 = vld [vmem:[#allocation5 + $0x3e0] sm:$0xff]
    %v714 = vld [vmem:[#allocation5 + $0x3e8] sm:$0xff]
    %v715 = vld [vmem:[#allocation5 + $0x3f0] sm:$0xff]
    %v716 = vld [vmem:[#allocation5 + $0x3f8] sm:$0xff]
    %v717 = vld [vmem:[%s4] sm:$0x3]
    %v719 = vlaneseq
    %v720 = vshrl.u32 %v719, 7
    %v721 = vsub.s32 0, %v720
    %v722 = vrot.slane %v717, %v721
    %v723 = vlaneseq
    %v724 = vshrl.u32 %v723, 7
    %v725 = vsub.s32 1, %v724
    %v726 = vrot.slane %v717, %v725
    %729 = vmatprep.subr.mxu0 %v590
    %730 = vmatpush1.msra.mxu0 %v589
    %731 = vmatprep.subr.mxu0 %v592
    %732 = vmatpush1.msra.mxu0 %v591
    %733 = vmatprep.subr.mxu0 %v594
    %734 = vmatpush1.msra.mxu0 %v593
    %735 = vmatprep.subr.mxu0 %v596
    %736 = vmatpush1.msra.mxu0 %v595
    %737 = vmatprep.subr.mxu0 %v598
    %738 = vmatpush1.msra.mxu0 %v597
    %739 = vmatprep.subr.mxu0 %v600
    %740 = vmatpush1.msra.mxu0 %v599
    %741 = vmatprep.subr.mxu0 %v602
    %742 = vmatpush1.msra.mxu0 %v601
    %743 = vmatprep.subr.mxu0 %v604
    %744 = vmatpush1.msra.mxu0 %v603
    %745 = vmatprep.subr.mxu0 %v606
    %746 = vmatpush1.msra.mxu0 %v605
    %747 = vmatprep.subr.mxu0 %v608
    %748 = vmatpush1.msra.mxu0 %v607
    %749 = vmatprep.subr.mxu0 %v610
    %750 = vmatpush1.msra.mxu0 %v609
    %751 = vmatprep.subr.mxu0 %v612
    %752 = vmatpush1.msra.mxu0 %v611
    %753 = vmatprep.subr.mxu0 %v614
    %754 = vmatpush1.msra.mxu0 %v613
    %755 = vmatprep.subr.mxu0 %v616
    %756 = vmatpush1.msra.mxu0 %v615
    %757 = vmatprep.subr.mxu0 %v618
    %758 = vmatpush1.msra.mxu0 %v617
    %759 = vmatprep.subr.mxu0 %v620
    %760 = vmatpush1.msra.mxu0 %v619
    %761 = vmatprep.subr.mxu0 %v622
    %762 = vmatpush1.msra.mxu0 %v621
    %763 = vmatprep.subr.mxu0 %v624
    %764 = vmatpush1.msra.mxu0 %v623
    %765 = vmatprep.subr.mxu0 %v626
    %766 = vmatpush1.msra.mxu0 %v625
    %767 = vmatprep.subr.mxu0 %v628
    %768 = vmatpush1.msra.mxu0 %v627
    %769 = vmatprep.subr.mxu0 %v630
    %770 = vmatpush1.msra.mxu0 %v629
    %771 = vmatprep.subr.mxu0 %v632
    %772 = vmatpush1.msra.mxu0 %v631
    %773 = vmatprep.subr.mxu0 %v634
    %774 = vmatpush1.msra.mxu0 %v633
    %775 = vmatprep.subr.mxu0 %v636
    %776 = vmatpush1.msra.mxu0 %v635
    %777 = vmatprep.subr.mxu0 %v638
    %778 = vmatpush1.msra.mxu0 %v637
    %779 = vmatprep.subr.mxu0 %v640
    %780 = vmatpush1.msra.mxu0 %v639
    %781 = vmatprep.subr.mxu0 %v642
    %782 = vmatpush1.msra.mxu0 %v641
    %783 = vmatprep.subr.mxu0 %v644
    %784 = vmatpush1.msra.mxu0 %v643
    %785 = vmatprep.subr.mxu0 %v646
    %786 = vmatpush1.msra.mxu0 %v645
    %787 = vmatprep.subr.mxu0 %v648
    %788 = vmatpush1.msra.mxu0 %v647
    %789 = vmatprep.subr.mxu0 %v650
    %790 = vmatpush1.msra.mxu0 %v649
    %791 = vmatprep.subr.mxu0 %v652
    %792 = vmatpush1.msra.mxu0 %v651
    %793 = vmatprep.mubr.f32.mxu0 %v586
    %794 = vmatmul.mubr.f32.gmra.mrb[0].mxu0 %v585
    %v795 = vpop.f32.mrb[0].mxu0
    %v796 = vadd.f32 %v722, %v795
    %v797 = vpop.f32.mrb[0].mxu0
    %v798 = vadd.f32 %v726, %v797
    %799 = vdwg.mxu0
    %800 = vmatprep.subr.mxu0 %v654
    %801 = vmatpush1.msra.mxu0 %v653
    %802 = vmatprep.subr.mxu0 %v656
    %803 = vmatpush1.msra.mxu0 %v655
    %804 = vmatprep.subr.mxu0 %v658
    %805 = vmatpush1.msra.mxu0 %v657
    %806 = vmatprep.subr.mxu0 %v660
    %807 = vmatpush1.msra.mxu0 %v659
    %808 = vmatprep.subr.mxu0 %v662
    %809 = vmatpush1.msra.mxu0 %v661
    %810 = vmatprep.subr.mxu0 %v664
    %811 = vmatpush1.msra.mxu0 %v663
    %812 = vmatprep.subr.mxu0 %v666
    %813 = vmatpush1.msra.mxu0 %v665
    %814 = vmatprep.subr.mxu0 %v668
    %815 = vmatpush1.msra.mxu0 %v667
    %816 = vmatprep.subr.mxu0 %v670
    %817 = vmatpush1.msra.mxu0 %v669
    %818 = vmatprep.subr.mxu0 %v672
    %819 = vmatpush1.msra.mxu0 %v671
    %820 = vmatprep.subr.mxu0 %v674
    %821 = vmatpush1.msra.mxu0 %v673
    %822 = vmatprep.subr.mxu0 %v676
    %823 = vmatpush1.msra.mxu0 %v675
    %824 = vmatprep.subr.mxu0 %v678
    %825 = vmatpush1.msra.mxu0 %v677
    %826 = vmatprep.subr.mxu0 %v680
    %827 = vmatpush1.msra.mxu0 %v679
    %828 = vmatprep.subr.mxu0 %v682
    %829 = vmatpush1.msra.mxu0 %v681
    %830 = vmatprep.subr.mxu0 %v684
    %831 = vmatpush1.msra.mxu0 %v683
    %832 = vmatprep.subr.mxu0 %v686
    %833 = vmatpush1.msra.mxu0 %v685
    %834 = vmatprep.subr.mxu0 %v688
    %835 = vmatpush1.msra.mxu0 %v687
    %836 = vmatprep.subr.mxu0 %v690
    %837 = vmatpush1.msra.mxu0 %v689
    %838 = vmatprep.subr.mxu0 %v692
    %839 = vmatpush1.msra.mxu0 %v691
    %840 = vmatprep.subr.mxu0 %v694
    %841 = vmatpush1.msra.mxu0 %v693
    %842 = vmatprep.subr.mxu0 %v696
    %843 = vmatpush1.msra.mxu0 %v695
    %844 = vmatprep.subr.mxu0 %v698
    %845 = vmatpush1.msra.mxu0 %v697
    %846 = vmatprep.subr.mxu0 %v700
    %847 = vmatpush1.msra.mxu0 %v699
    %848 = vmatprep.subr.mxu0 %v702
    %849 = vmatpush1.msra.mxu0 %v701
    %850 = vmatprep.subr.mxu0 %v704
    %851 = vmatpush1.msra.mxu0 %v703
    %852 = vmatprep.subr.mxu0 %v706
    %853 = vmatpush1.msra.mxu0 %v705
    %854 = vmatprep.subr.mxu0 %v708
    %855 = vmatpush1.msra.mxu0 %v707
    %856 = vmatprep.subr.mxu0 %v710
    %857 = vmatpush1.msra.mxu0 %v709
    %858 = vmatprep.subr.mxu0 %v712
    %859 = vmatpush1.msra.mxu0 %v711
    %860 = vmatprep.subr.mxu0 %v714
    %861 = vmatpush1.msra.mxu0 %v713
    %862 = vmatprep.subr.mxu0 %v716
    %863 = vmatpush1.msra.mxu0 %v715
    %864 = vmatprep.mubr.f32.mxu0 %v588
    %865 = vmatmul.mubr.f32.gmra.mrb[0].mxu0 %v587
    %v866 = vpop.f32.mrb[0].mxu0
    %v867 = vadd.f32 %v796, %v866
    %v868 = vpop.f32.mrb[0].mxu0
    %v869 = vadd.f32 %v798, %v868
    %870 = vdwg.mxu0
    %v871 = vmax.f32 %v867, 0.0
    %v872 = vmax.f32 %v869, 0.0
    %v873 = vld [vmem:[%s5] sm:$0xff]
    %v874 = vld [vmem:[%s5 + $0x8] sm:$0xff]
    %v875 = vld [vmem:[%s5 + $0x10] sm:$0xff]
    %v876 = vld [vmem:[%s5 + $0x18] sm:$0xff]
    %v877 = vld [vmem:[%s5 + $0x20] sm:$0xff]
    %v878 = vld [vmem:[%s5 + $0x28] sm:$0xff]
    %v879 = vld [vmem:[%s5 + $0x30] sm:$0xff]
    %v880 = vld [vmem:[%s5 + $0x38] sm:$0xff]
    %v881 = vld [vmem:[%s5 + $0x40] sm:$0xff]
    %v882 = vld [vmem:[%s5 + $0x48] sm:$0xff]
    %v883 = vld [vmem:[%s5 + $0x50] sm:$0xff]
    %v884 = vld [vmem:[%s5 + $0x58] sm:$0xff]
    %v885 = vld [vmem:[%s5 + $0x60] sm:$0xff]
    %v886 = vld [vmem:[%s5 + $0x68] sm:$0xff]
    %v887 = vld [vmem:[%s5 + $0x70] sm:$0xff]
    %v888 = vld [vmem:[%s5 + $0x78] sm:$0xff]
    %v889 = vld [vmem:[%s5 + $0x80] sm:$0xff]
    %v890 = vld [vmem:[%s5 + $0x88] sm:$0xff]
    %v891 = vld [vmem:[%s5 + $0x90] sm:$0xff]
    %v892 = vld [vmem:[%s5 + $0x98] sm:$0xff]
    %v893 = vld [vmem:[%s5 + $0xa0] sm:$0xff]
    %v894 = vld [vmem:[%s5 + $0xa8] sm:$0xff]
    %v895 = vld [vmem:[%s5 + $0xb0] sm:$0xff]
    %v896 = vld [vmem:[%s5 + $0xb8] sm:$0xff]
    %v897 = vld [vmem:[%s5 + $0xc0] sm:$0xff]
    %v898 = vld [vmem:[%s5 + $0xc8] sm:$0xff]
    %v899 = vld [vmem:[%s5 + $0xd0] sm:$0xff]
    %v900 = vld [vmem:[%s5 + $0xd8] sm:$0xff]
    %v901 = vld [vmem:[%s5 + $0xe0] sm:$0xff]
    %v902 = vld [vmem:[%s5 + $0xe8] sm:$0xff]
    %v903 = vld [vmem:[%s5 + $0xf0] sm:$0xff]
    %v904 = vld [vmem:[%s5 + $0xf8] sm:$0xff]
    %v905 = vld [vmem:[%s6] sm:$0x1]
    %906 = vmatprep.subr.mxu0 0.0
    %907 = vmatpush1.msra.mxu0 %v873
    %908 = vmatprep.subr.mxu0 0.0
    %909 = vmatpush1.msra.mxu0 %v874
    %910 = vmatprep.subr.mxu0 0.0
    %911 = vmatpush1.msra.mxu0 %v875
    %912 = vmatprep.subr.mxu0 0.0
    %913 = vmatpush1.msra.mxu0 %v876
    %914 = vmatprep.subr.mxu0 0.0
    %915 = vmatpush1.msra.mxu0 %v877
    %916 = vmatprep.subr.mxu0 0.0
    %917 = vmatpush1.msra.mxu0 %v878
    %918 = vmatprep.subr.mxu0 0.0
    %919 = vmatpush1.msra.mxu0 %v879
    %920 = vmatprep.subr.mxu0 0.0
    %921 = vmatpush1.msra.mxu0 %v880
    %922 = vmatprep.subr.mxu0 0.0
    %923 = vmatpush1.msra.mxu0 %v881
    %924 = vmatprep.subr.mxu0 0.0
    %925 = vmatpush1.msra.mxu0 %v882
    %926 = vmatprep.subr.mxu0 0.0
    %927 = vmatpush1.msra.mxu0 %v883
    %928 = vmatprep.subr.mxu0 0.0
    %929 = vmatpush1.msra.mxu0 %v884
    %930 = vmatprep.subr.mxu0 0.0
    %931 = vmatpush1.msra.mxu0 %v885
    %932 = vmatprep.subr.mxu0 0.0
    %933 = vmatpush1.msra.mxu0 %v886
    %934 = vmatprep.subr.mxu0 0.0
    %935 = vmatpush1.msra.mxu0 %v887
    %936 = vmatprep.subr.mxu0 0.0
    %937 = vmatpush1.msra.mxu0 %v888
    %938 = vmatprep.subr.mxu0 0.0
    %939 = vmatpush1.msra.mxu0 %v889
    %940 = vmatprep.subr.mxu0 0.0
    %941 = vmatpush1.msra.mxu0 %v890
    %942 = vmatprep.subr.mxu0 0.0
    %943 = vmatpush1.msra.mxu0 %v891
    %944 = vmatprep.subr.mxu0 0.0
    %945 = vmatpush1.msra.mxu0 %v892
    %946 = vmatprep.subr.mxu0 0.0
    %947 = vmatpush1.msra.mxu0 %v893
    %948 = vmatprep.subr.mxu0 0.0
    %949 = vmatpush1.msra.mxu0 %v894
    %950 = vmatprep.subr.mxu0 0.0
    %951 = vmatpush1.msra.mxu0 %v895
    %952 = vmatprep.subr.mxu0 0.0
    %953 = vmatpush1.msra.mxu0 %v896
    %954 = vmatprep.subr.mxu0 0.0
    %955 = vmatpush1.msra.mxu0 %v897
    %956 = vmatprep.subr.mxu0 0.0
    %957 = vmatpush1.msra.mxu0 %v898
    %958 = vmatprep.subr.mxu0 0.0
    %959 = vmatpush1.msra.mxu0 %v899
    %960 = vmatprep.subr.mxu0 0.0
    %961 = vmatpush1.msra.mxu0 %v900
    %962 = vmatprep.subr.mxu0 0.0
    %963 = vmatpush1.msra.mxu0 %v901
    %964 = vmatprep.subr.mxu0 0.0
    %965 = vmatpush1.msra.mxu0 %v902
    %966 = vmatprep.subr.mxu0 0.0
    %967 = vmatpush1.msra.mxu0 %v903
    %968 = vmatprep.subr.mxu0 0.0
    %969 = vmatpush1.msra.mxu0 %v904
    %970 = vmatprep.mubr.f32.mxu0 %v872
    %971 = vmatmul.mubr.f32.gmra.mrb[0].mxu0 %v871
    %v972 = vpop.f32.mrb[0].mxu0
    %v973 = vadd.f32 %v905, %v972
    %v974 = vpop.f32.mrb[0].mxu0
    %975 = vdwg.mxu0
    %vm976 = vcmask 253952
    %977 = vst.msk [vmem:[#allocation7] sm:$0x1] %vm976, %v973
    // Predicated region
    $region38: #{tpu_custom_call.1} parent=1 // pred_check
      _
    $region39: #{tpu_custom_call.1} parent=1 // pred_check_branch
      %979 = sbr.rel (0) target = $region41
    $region40: #{tpu_custom_call.1} parent=1 // pred_region
      %s981 = ssub.s32 16, 16
      %982 = vsyncadd [#allocation4], %s981
      %s984 = sshll.u32 [#allocation7], 4
      %s985 = int_to_ptr.vmem [resolvable:$true] %s984
      %987 = dma.vmem_to_hbm [thread:$0]  %s985, 16, %s7, [#allocation4]
    $region41: #{tpu_custom_call.1} parent=1 // pred_fallthru
      _
    // Predicated region
    $region42: #{tpu_custom_call.1} parent=1 // pred_check
      _
    $region43: #{tpu_custom_call.1} parent=1 // pred_check_branch
      %989 = sbr.rel (0) target = $region45
    $region44: #{tpu_custom_call.1} parent=1 // pred_region
      %990 = dma.done [#allocation4], 16
    $region45: #{tpu_custom_call.1} parent=1 // pred_fallthru
      _
    %991 = vsyncpa [#allocation3], 1
    %992 = vsyncpa [#allocation6], 1
    %993 = vsyncpa [#allocation4], 1

</llo_original>
